<compile_context>
chip_gen: v7x
topology: tpu7x:2x2x1
jax: 0.10.0
libtpu: 0.0.40
codegen_flags: <defaults>
</compile_context>

<pallas_src>
import math

import jax
import jax.numpy as jnp
from jax.experimental import pallas as pl
from jax.experimental.pallas import tpu as pltpu


# -----------------------------------------------------------------------------
# Pallas kernel: in-kernel per-channel weight fake-quant + one lane-dense
# matmul with the bias folded in.
#   w_ref: (O_pad, K+1)   columns [0, K) = raw weight rows, column K = bias
#   p_ref: (K+1, P_pad)   rows [0, K) = im2col patches, row K = ones (bias path)
#   o_ref: (O_pad, P_pad)
# -----------------------------------------------------------------------------
def conv_fq_matmul_kernel(w_ref, p_ref, o_ref):
    w_all = w_ref[...]                                   # (O_pad, K+1) f32
    k_w = w_all.shape[1] - 1                             # static

    # Lane mask: True for weight columns, False for the bias column.
    lane = jax.lax.broadcasted_iota(jnp.int32, w_all.shape, 1)
    is_weight = lane < k_w

    # fbgemm QAT default weight fake-quant: per-channel symmetric qint8.
    #   scale = max(|w|) / ((qmax - qmin) / 2) = max(|w|) / 127.5  (eps floor)
    abs_w = jnp.where(is_weight, jnp.abs(w_all), 0.0)
    max_pos = jnp.max(abs_w, axis=1, keepdims=True)      # (O_pad, 1) XLU reduce
    scale = jnp.maximum(max_pos / 127.5, jnp.finfo(jnp.float32).eps)
    wq = jnp.clip(jnp.round(w_all / scale), -128.0, 127.0) * scale
    w_fq = jnp.where(is_weight, wq, w_all)               # bias column untouched

    acc = jnp.dot(w_fq, p_ref[...], preferred_element_type=jnp.float32)
    o_ref[...] = acc.astype(o_ref.dtype)


def conv2d_qat_pallas(x, weight, bias):
    N, C, H, W = x.shape
    O, _, KH, KW = weight.shape
    OH, OW = H - KH + 1, W - KW + 1
    K = C * KH * KW
    P = N * OH * OW
    P_pad = ((P + 127) // 128) * 128
    O_pad = ((O + 7) // 8) * 8

    # ---- wrapper-side layout plumbing (all fused under the enclosing jit) ----
    # Transpose the small x once so the tap stack lands directly in
    # (c, kh, kw) row order -> the reshape to (K, P) is a free bitcast.
    x_t = jnp.transpose(x, (1, 0, 2, 3))                 # (C, N, H, W)
    taps = [x_t[:, :, kh:kh + OH, kw:kw + OW]
            for kh in range(KH) for kw in range(KW)]     # each (C, N, OH, OW)
    patches = jnp.stack(taps, axis=1).reshape(K, P)      # (K, P)

    # Lane-dense, zero-padded RHS with a ones row for the bias path.
    rhs = jnp.zeros((K + 1, P_pad), x.dtype)
    rhs = rhs.at[:K, :P].set(patches)
    rhs = rhs.at[K, :P].set(1.0)

    # LHS: raw weights (fake-quant happens in-kernel) + bias column,
    # zero-padded to O_pad rows for unmasked (8, 128) stores.
    lhs = jnp.zeros((O_pad, K + 1), x.dtype)
    lhs = lhs.at[:O, :K].set(weight.reshape(O, K))
    lhs = lhs.at[:O, K].set(bias)

    out = pl.pallas_call(
        conv_fq_matmul_kernel,
        out_shape=jax.ShapeDtypeStruct((O_pad, P_pad), x.dtype),
        grid=(1,),  # whole problem (< 100 KB) in a single invocation
        in_specs=[
            pl.BlockSpec((O_pad, K + 1), lambda i: (0, 0)),
            pl.BlockSpec((K + 1, P_pad), lambda i: (0, 0)),
        ],
        out_specs=pl.BlockSpec((O_pad, P_pad), lambda i: (0, 0)),
        compiler_params=pltpu.CompilerParams(
            dimension_semantics=("arbitrary",)),
    )(lhs, rhs)

    # Un-layout back to NCHW (same jit: fuses with the pad-slicing).
    return out[:O, :P].reshape(O, N, OH, OW).transpose(1, 0, 2, 3)


@jax.jit
def tudui_forward(x, weight, bias):
    # TODO(synk): QAT observer-state updates (training-side bookkeeping) are not
    # modeled; only the forward math (weight fake-quant + conv + bias) is.
    return conv2d_qat_pallas(x, weight, bias)


# Pure-JAX reference fake-quant (same math as the in-kernel version), used only
# for the correctness check against XLA's conv.
def _ref_fake_quant_weight(w):
    o = w.shape[0]
    w_flat = w.reshape(o, -1)
    max_pos = jnp.max(jnp.abs(w_flat), axis=1)
    scale = jnp.maximum(max_pos / 127.5, jnp.finfo(jnp.float32).eps)
    scale = scale.reshape(o, 1, 1, 1)
    return jnp.clip(jnp.round(w / scale), -128.0, 127.0) * scale


if __name__ == "__main__":
    # Shapes implied by the module: in_channels=3, out_channels=6, kernel=3.
    N, C, H, W = 2, 3, 16, 16
    O, KH, KW = 6, 3, 3

    key = jax.random.PRNGKey(0)
    kx, kw, kb = jax.random.split(key, 3)

    # Deterministic init mimicking PyTorch Conv2d defaults
    # (kaiming_uniform_(a=sqrt(5)) -> U(-1/sqrt(fan_in), 1/sqrt(fan_in))).
    fan_in = C * KH * KW
    bound = 1.0 / math.sqrt(fan_in)
    weight = jax.random.uniform(kw, (O, C, KH, KW), jnp.float32, -bound, bound)
    bias = jax.random.uniform(kb, (O,), jnp.float32, -bound, bound)
    x = jax.random.normal(kx, (N, C, H, W), jnp.float32)

    out = tudui_forward(x, weight, bias)
    out = jax.block_until_ready(out)

    # Reference: XLA conv on the same fake-quantized weights.
    w_fq = _ref_fake_quant_weight(weight)
    ref = jax.lax.conv_general_dilated(
        x, w_fq, window_strides=(1, 1), padding="VALID",
        dimension_numbers=("NCHW", "OIHW", "NCHW")) + bias.reshape(1, O, 1, 1)

    assert out.shape == (N, O, H - KH + 1, W - KW + 1)
    assert jnp.allclose(out, ref, atol=1e-4, rtol=1e-4)

    print("KERNEL_OK")
</pallas_src>

<mosaic_0001>
module attributes {stable_mosaic.version = 11 : i64} {
  func.func @conv_fq_matmul_kernel(%arg0: i32, %arg1: memref<8x28xf32, #tpu.memory_space<vmem>>, %arg2: memref<28x512xf32, #tpu.memory_space<vmem>>, %arg3: memref<8x512xf32, #tpu.memory_space<vmem>>) attributes {dimension_semantics = [#tpu.dimension_semantics<arbitrary>], iteration_bounds = array<i64: 1>, scalar_prefetch = 0 : i64, scratch_operands = 0 : i64, tpu.core_type = #tpu.core_type<tc>, window_params = [{pipeline_mode = #tpu.pipeline_mode<synchronous>, transform_indices = @transform_0, window_bounds = array<i64: 8, 28>}, {pipeline_mode = #tpu.pipeline_mode<synchronous>, transform_indices = @transform_1, window_bounds = array<i64: 28, 512>}, {pipeline_mode = #tpu.pipeline_mode<synchronous>, transform_indices = @transform_2, window_bounds = array<i64: 8, 512>}]} {
    %c0 = arith.constant 0 : index
    %c0_0 = arith.constant 0 : index
    %0 = vector.load %arg1[%c0, %c0_0] : memref<8x28xf32, #tpu.memory_space<vmem>>, vector<8x28xf32>
    %1 = tpu.iota {dimensions = array<i32: 1>} : vector<8x28xi32>
    %c27_i32 = arith.constant 27 : i32
    %2 = vector.broadcast %c27_i32 : i32 to vector<8x28xi32>
    %3 = arith.cmpi slt, %1, %2 : vector<8x28xi32>
    %4 = math.absf %0 : vector<8x28xf32>
    %cst = arith.constant 0.000000e+00 : f32
    %5 = vector.broadcast %cst : f32 to vector<8x28xf32>
    %6 = arith.select %3, %4, %5 : vector<8x28xi1>, vector<8x28xf32>
    %cst_1 = arith.constant dense<0xFF800000> : vector<8xf32>
    %7 = vector.multi_reduction <maximumf>, %6, %cst_1 [1] : vector<8x28xf32> to vector<8xf32>
    %8 = vector.shape_cast %7 : vector<8xf32> to vector<8x1xf32>
    %cst_2 = arith.constant 1.275000e+02 : f32
    %9 = vector.broadcast %cst_2 : f32 to vector<8x1xf32>
    %10 = arith.divf %8, %9 : vector<8x1xf32>
    %cst_3 = arith.constant 1.1920929E-7 : f32
    %11 = vector.broadcast %cst_3 : f32 to vector<8x1xf32>
    %12 = arith.maximumf %10, %11 : vector<8x1xf32>
    %13 = vector.broadcast %12 : vector<8x1xf32> to vector<8x28xf32>
    %14 = arith.divf %0, %13 : vector<8x28xf32>
    %15 = math.roundeven %14 : vector<8x28xf32>
    %cst_4 = arith.constant -1.280000e+02 : f32
    %cst_5 = arith.constant 1.270000e+02 : f32
    %16 = vector.broadcast %cst_4 : f32 to vector<8x28xf32>
    %17 = arith.maximumf %16, %15 : vector<8x28xf32>
    %18 = vector.broadcast %cst_5 : f32 to vector<8x28xf32>
    %19 = arith.minimumf %18, %17 : vector<8x28xf32>
    %20 = vector.broadcast %12 : vector<8x1xf32> to vector<8x28xf32>
    %21 = arith.mulf %19, %20 : vector<8x28xf32>
    %22 = arith.select %3, %21, %0 : vector<8x28xi1>, vector<8x28xf32>
    %c0_6 = arith.constant 0 : index
    %c0_7 = arith.constant 0 : index
    %23 = vector.load %arg2[%c0_6, %c0_7] : memref<28x512xf32, #tpu.memory_space<vmem>>, vector<28x512xf32>
    %cst_8 = arith.constant dense<0.000000e+00> : vector<8x512xf32>
    %24 = tpu.matmul %22, %23, %cst_8 {dimension_numbers = #tpu.dot_dimension_numbers<[1], [0], [0], [1], [0, 0, 1, 1], [], []>} : vector<8x28xf32>, vector<28x512xf32>, vector<8x512xf32> -> vector<8x512xf32>
    %c0_9 = arith.constant 0 : index
    %c0_10 = arith.constant 0 : index
    %25 = vector.load %arg3[%c0_9, %c0_10] : memref<8x512xf32, #tpu.memory_space<vmem>>, vector<8x512xf32>
    tpu.vector_store %arg3[%c0_9, %c0_10], %24 {strides = array<i32>} : memref<8x512xf32, #tpu.memory_space<vmem>>, vector<8x512xf32>,
    return
  }
  func.func @transform_0(%arg0: i32) -> (i32, i32) {
    %c0_i32 = arith.constant 0 : i32
    %c0_i32_0 = arith.constant 0 : i32
    %c0_i32_1 = arith.constant 0 : i32
    return %c0_i32, %c0_i32_0 : i32, i32
  }
  func.func @transform_1(%arg0: i32) -> (i32, i32) {
    %c0_i32 = arith.constant 0 : i32
    %c0_i32_0 = arith.constant 0 : i32
    %c0_i32_1 = arith.constant 0 : i32
    return %c0_i32, %c0_i32_0 : i32, i32
  }
  func.func @transform_2(%arg0: i32) -> (i32, i32) {
    %c0_i32 = arith.constant 0 : i32
    %c0_i32_0 = arith.constant 0 : i32
    %c0_i32_1 = arith.constant 0 : i32
    return %c0_i32, %c0_i32_0 : i32, i32
  }
}

</mosaic_0001>

<llo_original>
// kernel: tudui_forward.1
$region0: #{tudui_forward.1}
  #allocation0 [shape = 'u32[]', space=smem, size = 0x4, offset = 0x4, fixed_abs, tag = 'smem constant byte address 0x4 - core index']
  #allocation1 [shape = 'u32[144,128]{1,0:T(1,128)}', space=vmem, size = 0x12000, scoped, tag = 'internal scratch']
  %s0 = inlined_call_operand.vmem [shape: f32[8,28], index: 0, kind: input, shape index: {}]
  %s1 = inlined_call_operand.vmem [shape: f32[28,512], index: 1, kind: input, shape index: {}]
  %s2 = inlined_call_operand.vmem [shape: f32[8,512], index: 2, kind: output, shape index: {}]
  %s3 = sld [smem:[#allocation0]]
  $region18: #{tudui_forward.1} parent=0
    _
  %s5 = ssub.s32 1, %s3
  %s6 = scalar_select 0, %s5, %s3
  // Predicated region
  $region2: #{tudui_forward.1} parent=0 // pred_check
    _
  $region3: #{tudui_forward.1} parent=0 // pred_check_branch
    %8 = sbr.rel (0) target = $region5
  $region4: #{tudui_forward.1} parent=0 // pred_region
    _
  $region5: #{tudui_forward.1} parent=0 // pred_fallthru
    _
  // Predicated region
  $region6: #{tudui_forward.1} parent=0 // pred_check
    _
  $region7: #{tudui_forward.1} parent=0 // pred_check_branch
    %10 = sbr.rel (0) target = $region9
  $region8: #{tudui_forward.1} parent=0 // pred_region
    _
  $region9: #{tudui_forward.1} parent=0 // pred_fallthru
    _
  %v11 = vld [vmem:[%s0] sm:$0xff]
  %v12 = vlaneseq
  %v13 = vand.u32 %v12, 127
  %vm14 = vcmp.lt.s32.totalorder %v13, 27
  %v15 = vand.u32 2147483647, %v11
  %v16 = vsel %vm14, %v15, 0.0
  %vm17 = vcmask 228352
  %v18 = vsel %vm17, %v16, -inf
  %19 = vmax.xlane.f32.xlu0 %v18
  %v20 = vpop.xlane.xlu0 %19
  %v21 = vrcp.pop 127.5
  %v22 = vmul.f32 %v20, %v21
  %v23 = vmax.f32 %v22, 1.1920929e-07
  %v24 = vrcp.pop %v23
  %v25 = vmul.f32 %v11, %v24
  %v26 = vround.ne.pseudo %v25
  %v27 = vmax.f32 %v26, -128.0
  %v28 = vmin.f32 %v27, 127.0
  %v29 = vmul.f32 %v28, %v23
  %v30 = vsel %vm14, %v29, %v11
  %v31 = vld [vmem:[%s1] sm:$0xff]
  %v32 = vld [vmem:[%s1 + $0x8] sm:$0xff]
  %v33 = vld [vmem:[%s1 + $0x10] sm:$0xff]
  %v34 = vld [vmem:[%s1 + $0x18] sm:$0xff]
  %v35 = vld [vmem:[%s1 + $0x20] sm:$0xff]
  %v36 = vld [vmem:[%s1 + $0x28] sm:$0xff]
  %v37 = vld [vmem:[%s1 + $0x30] sm:$0xff]
  %v38 = vld [vmem:[%s1 + $0x38] sm:$0xff]
  %v39 = vld [vmem:[%s1 + $0x40] sm:$0xff]
  %v40 = vld [vmem:[%s1 + $0x48] sm:$0xff]
  %v41 = vld [vmem:[%s1 + $0x50] sm:$0xff]
  %v42 = vld [vmem:[%s1 + $0x58] sm:$0xff]
  %v43 = vld [vmem:[%s1 + $0x60] sm:$0xf]
  %v44 = vld [vmem:[%s1 + $0x68] sm:$0xf]
  %v45 = vld [vmem:[%s1 + $0x70] sm:$0xf]
  %v46 = vld [vmem:[%s1 + $0x78] sm:$0xf]
  %v48 = vsel %vm17, %v30, 0
  %vm50 = vcmask 1043456
  %v52 = vsel %vm50, %v43, 0
  %v55 = vsel %vm50, %v44, 0
  %v58 = vsel %vm50, %v45, 0
  %v61 = vsel %vm50, %v46, 0
  %63 = vmatprep.subr.mxu0 %v32
  %64 = vmatpush1.msra.mxu0 %v31
  %65 = vmatprep.subr.mxu0 %v36
  %66 = vmatpush1.msra.mxu0 %v35
  %67 = vmatprep.subr.mxu0 %v40
  %68 = vmatpush1.msra.mxu0 %v39
  %69 = vmatprep.subr.mxu0 %v55
  %70 = vmatpush1.msra.mxu0 %v52
  %71 = vmatprep.subr.mxu0 0.0
  %72 = vmatpush1.msra.mxu0 0.0
  %73 = vmatprep.subr.mxu0 0.0
  %74 = vmatpush1.msra.mxu0 0.0
  %75 = vmatprep.subr.mxu0 0.0
  %76 = vmatpush1.msra.mxu0 0.0
  %77 = vmatprep.subr.mxu0 0.0
  %78 = vmatpush1.msra.mxu0 0.0
  %79 = vmatprep.subr.mxu0 0.0
  %80 = vmatpush1.msra.mxu0 0.0
  %81 = vmatprep.subr.mxu0 0.0
  %82 = vmatpush1.msra.mxu0 0.0
  %83 = vmatprep.subr.mxu0 0.0
  %84 = vmatpush1.msra.mxu0 0.0
  %85 = vmatprep.subr.mxu0 0.0
  %86 = vmatpush1.msra.mxu0 0.0
  %87 = vmatprep.subr.mxu0 0.0
  %88 = vmatpush1.msra.mxu0 0.0
  %89 = vmatprep.subr.mxu0 0.0
  %90 = vmatpush1.msra.mxu0 0.0
  %91 = vmatprep.subr.mxu0 0.0
  %92 = vmatpush1.msra.mxu0 0.0
  %93 = vmatprep.subr.mxu0 0.0
  %94 = vmatpush1.msra.mxu0 0.0
  %95 = vmatprep.subr.mxu0 0.0
  %96 = vmatpush1.msra.mxu0 0.0
  %97 = vmatprep.subr.mxu0 0.0
  %98 = vmatpush1.msra.mxu0 0.0
  %99 = vmatprep.subr.mxu0 0.0
  %100 = vmatpush1.msra.mxu0 0.0
  %101 = vmatprep.subr.mxu0 0.0
  %102 = vmatpush1.msra.mxu0 0.0
  %103 = vmatprep.subr.mxu0 0.0
  %104 = vmatpush1.msra.mxu0 0.0
  %105 = vmatprep.subr.mxu0 0.0
  %106 = vmatpush1.msra.mxu0 0.0
  %107 = vmatprep.subr.mxu0 0.0
  %108 = vmatpush1.msra.mxu0 0.0
  %109 = vmatprep.subr.mxu0 0.0
  %110 = vmatpush1.msra.mxu0 0.0
  %111 = vmatprep.subr.mxu0 0.0
  %112 = vmatpush1.msra.mxu0 0.0
  %113 = vmatprep.subr.mxu0 0.0
  %114 = vmatpush1.msra.mxu0 0.0
  %115 = vmatprep.subr.mxu0 0.0
  %116 = vmatpush1.msra.mxu0 0.0
  %117 = vmatprep.subr.mxu0 0.0
  %118 = vmatpush1.msra.mxu0 0.0
  %119 = vmatprep.subr.mxu0 0.0
  %120 = vmatpush1.msra.mxu0 0.0
  %121 = vmatprep.subr.mxu0 0.0
  %122 = vmatpush1.msra.mxu0 0.0
  %123 = vmatprep.subr.mxu0 0.0
  %124 = vmatpush1.msra.mxu0 0.0
  %125 = vmatprep.subr.mxu0 0.0
  %126 = vmatpush1.msra.mxu0 0.0
  %127 = vmatprep.mubr.f32.mxu0 0.0
  %128 = vmatmul.mubr.f32.gmra.mrb[0].mxu0 %v48
  %v129 = vpop.f32.mrb[0].mxu0
  %v130 = vadd.f32 0.0, %v129
  %v131 = vpop.f32.mrb[0].mxu0
  %v132 = vadd.f32 0.0, %v131
  %133 = vdwg.mxu0
  %134 = vmatprep.subr.mxu0 %v34
  %135 = vmatpush1.msra.mxu0 %v33
  %136 = vmatprep.subr.mxu0 %v38
  %137 = vmatpush1.msra.mxu0 %v37
  %138 = vmatprep.subr.mxu0 %v42
  %139 = vmatpush1.msra.mxu0 %v41
  %140 = vmatprep.subr.mxu0 %v61
  %141 = vmatpush1.msra.mxu0 %v58
  %142 = vmatprep.subr.mxu0 0.0
  %143 = vmatpush1.msra.mxu0 0.0
  %144 = vmatprep.subr.mxu0 0.0
  %145 = vmatpush1.msra.mxu0 0.0
  %146 = vmatprep.subr.mxu0 0.0
  %147 = vmatpush1.msra.mxu0 0.0
  %148 = vmatprep.subr.mxu0 0.0
  %149 = vmatpush1.msra.mxu0 0.0
  %150 = vmatprep.subr.mxu0 0.0
  %151 = vmatpush1.msra.mxu0 0.0
  %152 = vmatprep.subr.mxu0 0.0
  %153 = vmatpush1.msra.mxu0 0.0
  %154 = vmatprep.subr.mxu0 0.0
  %155 = vmatpush1.msra.mxu0 0.0
  %156 = vmatprep.subr.mxu0 0.0
  %157 = vmatpush1.msra.mxu0 0.0
  %158 = vmatprep.subr.mxu0 0.0
  %159 = vmatpush1.msra.mxu0 0.0
  %160 = vmatprep.subr.mxu0 0.0
  %161 = vmatpush1.msra.mxu0 0.0
  %162 = vmatprep.subr.mxu0 0.0
  %163 = vmatpush1.msra.mxu0 0.0
  %164 = vmatprep.subr.mxu0 0.0
  %165 = vmatpush1.msra.mxu0 0.0
  %166 = vmatprep.subr.mxu0 0.0
  %167 = vmatpush1.msra.mxu0 0.0
  %168 = vmatprep.subr.mxu0 0.0
  %169 = vmatpush1.msra.mxu0 0.0
  %170 = vmatprep.subr.mxu0 0.0
  %171 = vmatpush1.msra.mxu0 0.0
  %172 = vmatprep.subr.mxu0 0.0
  %173 = vmatpush1.msra.mxu0 0.0
  %174 = vmatprep.subr.mxu0 0.0
  %175 = vmatpush1.msra.mxu0 0.0
  %176 = vmatprep.subr.mxu0 0.0
  %177 = vmatpush1.msra.mxu0 0.0
  %178 = vmatprep.subr.mxu0 0.0
  %179 = vmatpush1.msra.mxu0 0.0
  %180 = vmatprep.subr.mxu0 0.0
  %181 = vmatpush1.msra.mxu0 0.0
  %182 = vmatprep.subr.mxu0 0.0
  %183 = vmatpush1.msra.mxu0 0.0
  %184 = vmatprep.subr.mxu0 0.0
  %185 = vmatpush1.msra.mxu0 0.0
  %186 = vmatprep.subr.mxu0 0.0
  %187 = vmatpush1.msra.mxu0 0.0
  %188 = vmatprep.subr.mxu0 0.0
  %189 = vmatpush1.msra.mxu0 0.0
  %190 = vmatprep.subr.mxu0 0.0
  %191 = vmatpush1.msra.mxu0 0.0
  %192 = vmatprep.subr.mxu0 0.0
  %193 = vmatpush1.msra.mxu0 0.0
  %194 = vmatprep.subr.mxu0 0.0
  %195 = vmatpush1.msra.mxu0 0.0
  %196 = vmatprep.subr.mxu0 0.0
  %197 = vmatpush1.msra.mxu0 0.0
  %198 = vmatprep.mubr.f32.mxu0 0.0
  %199 = vmatmul.mubr.f32.gmra.mrb[0].mxu0 %v48
  %v200 = vpop.f32.mrb[0].mxu0
  %v201 = vadd.f32 0.0, %v200
  %v202 = vpop.f32.mrb[0].mxu0
  %v203 = vadd.f32 0.0, %v202
  %204 = vdwg.mxu0
  %205 = vst [vmem:[%s2] sm:$0xff] %v130
  %206 = vst [vmem:[%s2 + $0x8] sm:$0xff] %v132
  %207 = vst [vmem:[%s2 + $0x10] sm:$0xff] %v201
  %208 = vst [vmem:[%s2 + $0x18] sm:$0xff] %v203
  // Predicated region
  $region10: #{tudui_forward.1} parent=0 // pred_check
    _
  $region11: #{tudui_forward.1} parent=0 // pred_check_branch
    %210 = sbr.rel (0) target = $region13
  $region12: #{tudui_forward.1} parent=0 // pred_region
    _
  $region13: #{tudui_forward.1} parent=0 // pred_fallthru
    _
  // Predicated region
  $region14: #{tudui_forward.1} parent=0 // pred_check
    _
  $region15: #{tudui_forward.1} parent=0 // pred_check_branch
    %212 = sbr.rel (0) target = $region17
  $region16: #{tudui_forward.1} parent=0 // pred_region
    _
  $region17: #{tudui_forward.1} parent=0 // pred_fallthru
    _

</llo_original>
